<compile_context>
chip_gen: v7x
topology: tpu7x:2x2x1
jax: 0.10.0
libtpu: 0.0.40
codegen_flags: <defaults>
</compile_context>

<pallas_src>
import functools

import jax
import jax.numpy as jnp
from jax.experimental import pallas as pl
from jax.experimental.pallas import tpu as pltpu


def attention_kernel(x_ref, w1t_ref, b1_ref, w2_ref, b2_ref, wx_ref, wt_ref,
                     *, num_real_pathways):
    bt, p, d = x_ref.shape            # block shape: [bb, P_pad, D]
    h_dim = w1t_ref.shape[1]

    x = x_ref[...].astype(jnp.float32)          # [bb, P, D]
    # Collapse batch into the sublane dim; layout-preserving because the
    # wrapper pads P to a multiple of 8.
    x2 = x.reshape(bt * p, d)                   # [bb*P, D]

    # Linear(D, H) + ReLU: one MXU matmul for all bb*P rows (f32 in, f32 acc).
    h = jnp.dot(x2, w1t_ref[...], preferred_element_type=jnp.float32) + b1_ref[...]
    h = jnp.maximum(h, 0.0)                     # [bb*P, H]

    # Linear(H, 1) as a VPU multiply + lane reduce (no wasted N=1 MXU pass).
    h3 = h.reshape(bt, p, h_dim)                # [bb, P, H]
    s = jnp.sum(h3 * w2_ref[...], axis=-1, keepdims=True) + b2_ref[0, 0]  # [bb, P, 1]

    # Mask padded pathway rows out of the softmax (they must get weight 0).
    if num_real_pathways < p:
        pid = jax.lax.broadcasted_iota(jnp.int32, (bt, p, 1), 1)
        s = jnp.where(pid < num_real_pathways, s, -jnp.inf)

    # Softmax over the pathway axis, in f32; exact reciprocal keeps 1e-5 tol.
    m = jnp.max(s, axis=1, keepdims=True)       # [bb, 1, 1]
    e = jnp.exp(s - m)
    denom = jnp.sum(e, axis=1, keepdims=True)
    w = e * pl.reciprocal(denom, approx=False)  # [bb, P, 1]

    # Lane-dense stores: weights as [bb, P], weighted_x as [bb, P*D].
    wt_ref[...] = w.reshape(bt, p).astype(wt_ref.dtype)
    wx = x * w                                  # [bb, P, D]
    wx_ref[...] = wx.reshape(bt, p * d).astype(wx_ref.dtype)


def attention_layer(x, w1, b1, w2, b2, *, vmem_budget_bytes=8 * 1024 * 1024):
    """x: [B, P, D]; w1: [H, D]; b1: [H]; w2: [1, H]; b2: [1] (PyTorch Linear layout)."""
    B, P, D = x.shape
    H = w1.shape[0]

    # Pad P to a sublane multiple so in-kernel reshapes are layout-preserving.
    P_pad = -(-P // 8) * 8

    # Derive the batch tile from a VMEM budget (double-buffered x + wx + w
    # tiles plus the resident params).  At small problem sizes this collapses
    # to bb = B -> grid of one step; only tile when the working set actually
    # approaches the VMEM limit (budget chosen to fit v5e/v6e/v7x defaults).
    per_batch_bytes = 2 * P_pad * (4 * D + 4 * D + 4)
    param_bytes = 4 * (D * H + 2 * H) + 4096
    bb = max(1, (vmem_budget_bytes - param_bytes) // per_batch_bytes)
    if bb >= B:
        bb = B                                   # single grid step
    else:
        bb = max(8, (bb // 8) * 8)               # sublane-align 2-D output blocks

    num_steps = pl.cdiv(B, bb)
    B_pad = num_steps * bb

    x_in = x
    if B_pad != B or P_pad != P:
        x_in = jnp.pad(x, ((0, B_pad - B), (0, P_pad - P), (0, 0)))

    # Pre-transpose / reshape params so the kernel does plain row-major math.
    w1t = jnp.asarray(w1).T.astype(jnp.float32)              # [D, H]
    b1r = jnp.asarray(b1).reshape(1, H).astype(jnp.float32)  # [1, H]
    w2r = jnp.asarray(w2).reshape(1, H).astype(jnp.float32)  # [1, H] (row, no transpose)
    b2r = jnp.asarray(b2).reshape(1, 1).astype(jnp.float32)  # [1, 1] scalar -> SMEM

    out_shapes = (
        jax.ShapeDtypeStruct((B_pad, P_pad * D), x.dtype),   # weighted_x (lane-dense)
        jax.ShapeDtypeStruct((B_pad, P_pad), x.dtype),       # weights
    )

    kernel = functools.partial(attention_kernel, num_real_pathways=P)

    wx_flat, w_flat = pl.pallas_call(
        kernel,
        out_shape=out_shapes,
        grid=(num_steps,),
        in_specs=[
            pl.BlockSpec((bb, P_pad, D), lambda i: (i, 0, 0)),           # x tile
            pl.BlockSpec((D, H), lambda i: (0, 0)),                      # W1^T (resident)
            pl.BlockSpec((1, H), lambda i: (0, 0)),                      # b1
            pl.BlockSpec((1, H), lambda i: (0, 0)),                      # w2 row
            pl.BlockSpec(memory_space=pltpu.MemorySpace.SMEM),           # b2 scalar
        ],
        out_specs=[
            pl.BlockSpec((bb, P_pad * D), lambda i: (i, 0)),
            pl.BlockSpec((bb, P_pad), lambda i: (i, 0)),
        ],
        compiler_params=pltpu.CompilerParams(
            dimension_semantics=("parallel",),
        ),
    )(x_in, w1t, b1r, w2r, b2r)

    weighted_x = wx_flat.reshape(B_pad, P_pad, D)[:B, :P, :]
    weights = w_flat[:B, :P].reshape(B, P, 1)
    return weighted_x, weights


def attention_layer_ref(x, w1, b1, w2, b2):
    """Pure-JAX reference mirroring the PyTorch module."""
    h = jnp.maximum(jnp.einsum("bpd,hd->bph", x, w1) + b1, 0.0)
    s = jnp.einsum("bph,oh->bpo", h, w2) + b2          # [B, P, 1]
    w = jax.nn.softmax(s, axis=1)
    return x * w, w


if __name__ == "__main__":
    # Small shapes: batch=8, num_pathways=8, input_dim=32 (hidden = 16).
    # The VMEM-derived tile gives bb = B -> a single grid step.
    B, P, D = 8, 8, 32
    H = D // 2

    key = jax.random.PRNGKey(0)
    kx, k1, k2, k3, k4 = jax.random.split(key, 5)

    x = jax.random.normal(kx, (B, P, D), dtype=jnp.float32)

    # Deterministic synthetic parameters (PyTorch nn.Linear shapes: [out, in]).
    bound1 = 1.0 / jnp.sqrt(D)
    bound2 = 1.0 / jnp.sqrt(H)
    w1 = jax.random.uniform(k1, (H, D), jnp.float32, -bound1, bound1)
    b1 = jax.random.uniform(k2, (H,), jnp.float32, -bound1, bound1)
    w2 = jax.random.uniform(k3, (1, H), jnp.float32, -bound2, bound2)
    b2 = jax.random.uniform(k4, (1,), jnp.float32, -bound2, bound2)

    weighted_x, weights = attention_layer(x, w1, b1, w2, b2)
    jax.block_until_ready((weighted_x, weights))

    wx_ref, w_ref = attention_layer_ref(x, w1, b1, w2, b2)
    assert weighted_x.shape == (B, P, D) and weights.shape == (B, P, 1)
    assert jnp.allclose(weighted_x, wx_ref, atol=1e-5, rtol=1e-5)
    assert jnp.allclose(weights, w_ref, atol=1e-5, rtol=1e-5)

    print("KERNEL_OK")
</pallas_src>

<mosaic_0001>
module attributes {stable_mosaic.version = 11 : i64} {
  func.func @attention_kernel(%arg0: i32, %arg1: memref<8x8x32xf32, #tpu.memory_space<vmem>>, %arg2: memref<32x16xf32, #tpu.memory_space<vmem>>, %arg3: memref<1x16xf32, #tpu.memory_space<vmem>>, %arg4: memref<1x16xf32, #tpu.memory_space<vmem>>, %arg5: memref<1x1xf32, #tpu.memory_space<smem>>, %arg6: memref<8x256xf32, #tpu.memory_space<vmem>>, %arg7: memref<8x8xf32, #tpu.memory_space<vmem>>) attributes {dimension_semantics = [#tpu.dimension_semantics<parallel>], iteration_bounds = array<i64: 1>, scalar_prefetch = 0 : i64, scratch_operands = 0 : i64, tpu.core_type = #tpu.core_type<tc>, window_params = [{transform_indices = @transform_0, window_bounds = array<i64: 8, 8, 32>}, {pipeline_mode = #tpu.pipeline_mode<synchronous>, transform_indices = @transform_1, window_bounds = array<i64: 32, 16>}, {pipeline_mode = #tpu.pipeline_mode<synchronous>, transform_indices = @transform_2, window_bounds = array<i64: 1, 16>}, {pipeline_mode = #tpu.pipeline_mode<synchronous>, transform_indices = @transform_3, window_bounds = array<i64: 1, 16>}, {transform_indices = @transform_4, window_bounds = array<i64: 1, 1>}, {transform_indices = @transform_5, window_bounds = array<i64: 8, 256>}, {transform_indices = @transform_6, window_bounds = array<i64: 8, 8>}]} {
    %c0 = arith.constant 0 : index
    %c0_0 = arith.constant 0 : index
    %c0_1 = arith.constant 0 : index
    %0 = vector.load %arg1[%c0, %c0_0, %c0_1] : memref<8x8x32xf32, #tpu.memory_space<vmem>>, vector<8x8x32xf32>
    %1 = vector.shape_cast %0 : vector<8x8x32xf32> to vector<64x32xf32>
    %c0_2 = arith.constant 0 : index
    %c0_3 = arith.constant 0 : index
    %2 = vector.load %arg2[%c0_2, %c0_3] : memref<32x16xf32, #tpu.memory_space<vmem>>, vector<32x16xf32>
    %cst = arith.constant dense<0.000000e+00> : vector<64x16xf32>
    %3 = tpu.matmul %1, %2, %cst {dimension_numbers = #tpu.dot_dimension_numbers<[1], [0], [0], [1], [0, 0, 1, 1], [], []>} : vector<64x32xf32>, vector<32x16xf32>, vector<64x16xf32> -> vector<64x16xf32>
    %c0_4 = arith.constant 0 : index
    %c0_5 = arith.constant 0 : index
    %4 = vector.load %arg3[%c0_4, %c0_5] : memref<1x16xf32, #tpu.memory_space<vmem>>, vector<1x16xf32>
    %5 = vector.broadcast %4 : vector<1x16xf32> to vector<64x16xf32>
    %6 = arith.addf %3, %5 : vector<64x16xf32>
    %cst_6 = arith.constant 0.000000e+00 : f32
    %7 = vector.broadcast %cst_6 : f32 to vector<64x16xf32>
    %8 = arith.maximumf %6, %7 : vector<64x16xf32>
    %9 = vector.shape_cast %8 : vector<64x16xf32> to vector<8x8x16xf32>
    %c0_7 = arith.constant 0 : index
    %c0_8 = arith.constant 0 : index
    %10 = vector.load %arg4[%c0_7, %c0_8] : memref<1x16xf32, #tpu.memory_space<vmem>>, vector<1x16xf32>
    %11 = vector.shape_cast %10 : vector<1x16xf32> to vector<1x1x16xf32>
    %12 = vector.broadcast %11 : vector<1x1x16xf32> to vector<8x8x16xf32>
    %13 = arith.mulf %9, %12 : vector<8x8x16xf32>
    %cst_9 = arith.constant dense<0.000000e+00> : vector<8x8xf32>
    %14 = vector.multi_reduction <add>, %13, %cst_9 [2] : vector<8x8x16xf32> to vector<8x8xf32>
    %15 = vector.shape_cast %14 : vector<8x8xf32> to vector<8x8x1xf32>
    %c0_10 = arith.constant 0 : index
    %c0_11 = arith.constant 0 : index
    %16 = memref.load %arg5[%c0_10, %c0_11] : memref<1x1xf32, #tpu.memory_space<smem>>
    %17 = vector.broadcast %16 : f32 to vector<8x8x1xf32>
    %18 = arith.addf %15, %17 : vector<8x8x1xf32>
    %cst_12 = arith.constant dense<0xFF800000> : vector<8x1xf32>
    %19 = vector.multi_reduction <maximumf>, %18, %cst_12 [1] : vector<8x8x1xf32> to vector<8x1xf32>
    %20 = vector.shape_cast %19 : vector<8x1xf32> to vector<8x1x1xf32>
    %21 = vector.broadcast %20 : vector<8x1x1xf32> to vector<8x8x1xf32>
    %22 = arith.subf %18, %21 : vector<8x8x1xf32>
    %23 = math.exp %22 : vector<8x8x1xf32>
    %cst_13 = arith.constant dense<0.000000e+00> : vector<8x1xf32>
    %24 = vector.multi_reduction <add>, %23, %cst_13 [1] : vector<8x8x1xf32> to vector<8x1xf32>
    %25 = vector.shape_cast %24 : vector<8x1xf32> to vector<8x1x1xf32>
    %26 = tpu.reciprocal %25 : vector<8x1x1xf32> -> vector<8x1x1xf32>
    %27 = vector.broadcast %26 : vector<8x1x1xf32> to vector<8x8x1xf32>
    %28 = arith.mulf %23, %27 : vector<8x8x1xf32>
    %29 = vector.shape_cast %28 : vector<8x8x1xf32> to vector<8x8xf32>
    %c0_14 = arith.constant 0 : index
    %c0_15 = arith.constant 0 : index
    %30 = vector.load %arg7[%c0_14, %c0_15] : memref<8x8xf32, #tpu.memory_space<vmem>>, vector<8x8xf32>
    tpu.vector_store %arg7[%c0_14, %c0_15], %29 {strides = array<i32>} : memref<8x8xf32, #tpu.memory_space<vmem>>, vector<8x8xf32>,
    %31 = vector.broadcast %28 : vector<8x8x1xf32> to vector<8x8x32xf32>
    %32 = arith.mulf %0, %31 : vector<8x8x32xf32>
    %33 = vector.shape_cast %32 : vector<8x8x32xf32> to vector<8x256xf32>
    %c0_16 = arith.constant 0 : index
    %c0_17 = arith.constant 0 : index
    %34 = vector.load %arg6[%c0_16, %c0_17] : memref<8x256xf32, #tpu.memory_space<vmem>>, vector<8x256xf32>
    tpu.vector_store %arg6[%c0_16, %c0_17], %33 {strides = array<i32>} : memref<8x256xf32, #tpu.memory_space<vmem>>, vector<8x256xf32>,
    return
  }
  func.func @transform_0(%arg0: i32) -> (i32, i32, i32) {
    %c0_i32 = arith.constant 0 : i32
    %c0_i32_0 = arith.constant 0 : i32
    %c0_i32_1 = arith.constant 0 : i32
    return %arg0, %c0_i32, %c0_i32_0 : i32, i32, i32
  }
  func.func @transform_1(%arg0: i32) -> (i32, i32) {
    %c0_i32 = arith.constant 0 : i32
    %c0_i32_0 = arith.constant 0 : i32
    %c0_i32_1 = arith.constant 0 : i32
    return %c0_i32, %c0_i32_0 : i32, i32
  }
  func.func @transform_2(%arg0: i32) -> (i32, i32) {
    %c0_i32 = arith.constant 0 : i32
    %c0_i32_0 = arith.constant 0 : i32
    %c0_i32_1 = arith.constant 0 : i32
    return %c0_i32, %c0_i32_0 : i32, i32
  }
  func.func @transform_3(%arg0: i32) -> (i32, i32) {
    %c0_i32 = arith.constant 0 : i32
    %c0_i32_0 = arith.constant 0 : i32
    %c0_i32_1 = arith.constant 0 : i32
    return %c0_i32, %c0_i32_0 : i32, i32
  }
  func.func @transform_4(%arg0: i32) -> (i32, i32) {
    %c0_i32 = arith.constant 0 : i32
    %c0_i32_0 = arith.constant 0 : i32
    %c0_i32_1 = arith.constant 0 : i32
    return %c0_i32, %c0_i32_0 : i32, i32
  }
  func.func @transform_5(%arg0: i32) -> (i32, i32) {
    %c0_i32 = arith.constant 0 : i32
    %c0_i32_0 = arith.constant 0 : i32
    return %arg0, %c0_i32 : i32, i32
  }
  func.func @transform_6(%arg0: i32) -> (i32, i32) {
    %c0_i32 = arith.constant 0 : i32
    %c0_i32_0 = arith.constant 0 : i32
    return %arg0, %c0_i32 : i32, i32
  }
}

</mosaic_0001>

<llo_original>
// kernel: tpu_custom_call.1
$region0: #{tpu_custom_call.1}
  #allocation0 [shape = 'u32[]', space=smem, size = 0x4, offset = 0x4, fixed_abs, tag = 'smem constant byte address 0x4 - core index']
  #allocation1 [shape = 'u32[144,128]{1,0:T(1,128)}', space=vmem, size = 0x12000, scoped, tag = 'internal scratch']
  #allocation2 [shape = 'f32[1,1]{1,0:T(1,128)S(6)}', space=smem, size = 0x200, scoped, tag = 'scoped memory for tpu_custom_call.1']
  %s0 = inlined_call_operand.hbm [shape: f32[8,8,32], index: 0, kind: input, shape index: {}]
  %s1 = inlined_call_operand.vmem [shape: f32[32,16], index: 1, kind: input, shape index: {}]
  %s2 = inlined_call_operand.vmem [shape: f32[1,16], index: 2, kind: input, shape index: {}]
  %s3 = inlined_call_operand.vmem [shape: f32[1,16], index: 3, kind: input, shape index: {}]
  %s4 = inlined_call_operand.<no memory space> [shape: f32[1,1], index: 4, kind: input, shape index: {}]
  %s5 = inlined_call_operand.hbm [shape: f32[8,256], index: 5, kind: output, shape index: {0}]
  %s6 = inlined_call_operand.hbm [shape: f32[8,8], index: 6, kind: output, shape index: {1}]
  %7 = xla_tuple %s5, %s6
  %s8 = sld [smem:[#allocation0]]
  $region42: #{tpu_custom_call.1} parent=0
    _
  %s10 = ssub.s32 1, %s8
  %s11 = scalar_select 0, %s10, %s8
  %12 = sst [smem:[#allocation2]] %s4
  $region1: #{tpu_custom_call.1} parent=0
    #allocation3 [shape = 'u8[32768]{0}', space=vmem, size = 0x8000, scoped, tag = 'input window, operand 0, single buffered']
    #allocation4 [shape = 's32[1]{0}', space=sflag, size = 0x4, scoped, tag = 'scoped memory for tpu_custom_call.1']
    #allocation5 [shape = 's32[1]{0}', space=sflag, size = 0x4, scoped, tag = 'scoped memory for tpu_custom_call.1']
    #allocation6 [shape = 'u8[8192]{0}', space=vmem, size = 0x2000, scoped, tag = 'output window, operand 0, single buffered']
    #allocation7 [shape = 'u8[4096]{0}', space=vmem, size = 0x1000, scoped, tag = 'output window, operand 1, single buffered']
    #allocation8 [shape = 's32[1]{0}', space=sflag, size = 0x4, scoped, tag = 'scoped memory for tpu_custom_call.1']
    %13 = vsyncpa [#allocation4], 0
    %14 = vsyncpa [#allocation5], 0
    %15 = vsyncpa [#allocation8], 0
    // Predicated region
    $region2: #{tpu_custom_call.1} parent=1 // pred_check
      _
    $region3: #{tpu_custom_call.1} parent=1 // pred_check_branch
      %17 = sbr.rel (0) target = $region5
    $region4: #{tpu_custom_call.1} parent=1 // pred_region
      %s19 = ssub.s32 1024, 1024
      %20 = vsyncadd [#allocation4], %s19
      %s21 = sshll.u32 [#allocation3], 4
      %s22 = int_to_ptr.vmem [resolvable:$true] %s21
      %27 = dma.hbm_to_vmem [thread:$0]  %s0, 1024, %s22, [#allocation4], 128, 128, 8
    $region5: #{tpu_custom_call.1} parent=1 // pred_fallthru
      _
    // Predicated region
    $region6: #{tpu_custom_call.1} parent=1 // pred_check
      _
    $region7: #{tpu_custom_call.1} parent=1 // pred_check_branch
      %29 = sbr.rel (0) target = $region9
    $region8: #{tpu_custom_call.1} parent=1 // pred_region
      _
    $region9: #{tpu_custom_call.1} parent=1 // pred_fallthru
      _
    // Predicated region
    $region10: #{tpu_custom_call.1} parent=1 // pred_check
      _
    $region11: #{tpu_custom_call.1} parent=1 // pred_check_branch
      %31 = sbr.rel (0) target = $region13
    $region12: #{tpu_custom_call.1} parent=1 // pred_region
      _
    $region13: #{tpu_custom_call.1} parent=1 // pred_fallthru
      _
    // Predicated region
    $region14: #{tpu_custom_call.1} parent=1 // pred_check
      _
    $region15: #{tpu_custom_call.1} parent=1 // pred_check_branch
      %33 = sbr.rel (0) target = $region17
    $region16: #{tpu_custom_call.1} parent=1 // pred_region
      _
    $region17: #{tpu_custom_call.1} parent=1 // pred_fallthru
      _
    // Predicated region
    $region18: #{tpu_custom_call.1} parent=1 // pred_check
      _
    $region19: #{tpu_custom_call.1} parent=1 // pred_check_branch
      %35 = sbr.rel (0) target = $region21
    $region20: #{tpu_custom_call.1} parent=1 // pred_region
      _
    $region21: #{tpu_custom_call.1} parent=1 // pred_fallthru
      _
    // Predicated region
    $region22: #{tpu_custom_call.1} parent=1 // pred_check
      _
    $region23: #{tpu_custom_call.1} parent=1 // pred_check_branch
      %37 = sbr.rel (0) target = $region25
    $region24: #{tpu_custom_call.1} parent=1 // pred_region
      %38 = dma.done [#allocation4], 1024
    $region25: #{tpu_custom_call.1} parent=1 // pred_fallthru
      _
    %v39 = vld [vmem:[#allocation3] sm:$0xff]
    %v40 = vld [vmem:[#allocation3 + $0x8] sm:$0xff]
    %v41 = vld [vmem:[#allocation3 + $0x10] sm:$0xff]
    %v42 = vld [vmem:[#allocation3 + $0x18] sm:$0xff]
    %v43 = vld [vmem:[#allocation3 + $0x20] sm:$0xff]
    %v44 = vld [vmem:[#allocation3 + $0x28] sm:$0xff]
    %v45 = vld [vmem:[#allocation3 + $0x30] sm:$0xff]
    %v46 = vld [vmem:[#allocation3 + $0x38] sm:$0xff]
    %v47 = vld [vmem:[%s1] sm:$0xff]
    %v48 = vld [vmem:[%s1 + $0x8] sm:$0xff]
    %v49 = vld [vmem:[%s1 + $0x10] sm:$0xff]
    %v50 = vld [vmem:[%s1 + $0x18] sm:$0xff]
    %v51 = vld [vmem:[%s2] sm:$0x1]
    %v53 = vlaneseq
    %v54 = vshrl.u32 %v53, 7
    %v55 = vsub.s32 0, %v54
    %v56 = vrot.slane %v51, %v55
    %vm58 = vcmask 261120
    %v60 = vsel %vm58, %v39, 0
    %v63 = vsel %vm58, %v40, 0
    %v66 = vsel %vm58, %v41, 0
    %v69 = vsel %vm58, %v42, 0
    %v72 = vsel %vm58, %v43, 0
    %v75 = vsel %vm58, %v44, 0
    %v78 = vsel %vm58, %v45, 0
    %v81 = vsel %vm58, %v46, 0
    %83 = vmatprep.subr.mxu0 0.0
    %84 = vmatpush1.msra.mxu0 %v47
    %85 = vmatprep.subr.mxu0 0.0
    %86 = vmatpush1.msra.mxu0 %v48
    %87 = vmatprep.subr.mxu0 0.0
    %88 = vmatpush1.msra.mxu0 %v49
    %89 = vmatprep.subr.mxu0 0.0
    %90 = vmatpush1.msra.mxu0 %v50
    %91 = vmatprep.subr.mxu0 0.0
    %92 = vmatpush1.msra.mxu0 0.0
    %93 = vmatprep.subr.mxu0 0.0
    %94 = vmatpush1.msra.mxu0 0.0
    %95 = vmatprep.subr.mxu0 0.0
    %96 = vmatpush1.msra.mxu0 0.0
    %97 = vmatprep.subr.mxu0 0.0
    %98 = vmatpush1.msra.mxu0 0.0
    %99 = vmatprep.subr.mxu0 0.0
    %100 = vmatpush1.msra.mxu0 0.0
    %101 = vmatprep.subr.mxu0 0.0
    %102 = vmatpush1.msra.mxu0 0.0
    %103 = vmatprep.subr.mxu0 0.0
    %104 = vmatpush1.msra.mxu0 0.0
    %105 = vmatprep.subr.mxu0 0.0
    %106 = vmatpush1.msra.mxu0 0.0
    %107 = vmatprep.subr.mxu0 0.0
    %108 = vmatpush1.msra.mxu0 0.0
    %109 = vmatprep.subr.mxu0 0.0
    %110 = vmatpush1.msra.mxu0 0.0
    %111 = vmatprep.subr.mxu0 0.0
    %112 = vmatpush1.msra.mxu0 0.0
    %113 = vmatprep.subr.mxu0 0.0
    %114 = vmatpush1.msra.mxu0 0.0
    %115 = vmatprep.subr.mxu0 0.0
    %116 = vmatpush1.msra.mxu0 0.0
    %117 = vmatprep.subr.mxu0 0.0
    %118 = vmatpush1.msra.mxu0 0.0
    %119 = vmatprep.subr.mxu0 0.0
    %120 = vmatpush1.msra.mxu0 0.0
    %121 = vmatprep.subr.mxu0 0.0
    %122 = vmatpush1.msra.mxu0 0.0
    %123 = vmatprep.subr.mxu0 0.0
    %124 = vmatpush1.msra.mxu0 0.0
    %125 = vmatprep.subr.mxu0 0.0
    %126 = vmatpush1.msra.mxu0 0.0
    %127 = vmatprep.subr.mxu0 0.0
    %128 = vmatpush1.msra.mxu0 0.0
    %129 = vmatprep.subr.mxu0 0.0
    %130 = vmatpush1.msra.mxu0 0.0
    %131 = vmatprep.subr.mxu0 0.0
    %132 = vmatpush1.msra.mxu0 0.0
    %133 = vmatprep.subr.mxu0 0.0
    %134 = vmatpush1.msra.mxu0 0.0
    %135 = vmatprep.subr.mxu0 0.0
    %136 = vmatpush1.msra.mxu0 0.0
    %137 = vmatprep.subr.mxu0 0.0
    %138 = vmatpush1.msra.mxu0 0.0
    %139 = vmatprep.subr.mxu0 0.0
    %140 = vmatpush1.msra.mxu0 0.0
    %141 = vmatprep.subr.mxu0 0.0
    %142 = vmatpush1.msra.mxu0 0.0
    %143 = vmatprep.subr.mxu0 0.0
    %144 = vmatpush1.msra.mxu0 0.0
    %145 = vmatprep.subr.mxu0 0.0
    %146 = vmatpush1.msra.mxu0 0.0
    %147 = vmatprep.mubr.f32.mxu0 0.0
    %148 = vmatmul.mubr.f32.gmra.mrb[0].mxu0 %v60
    %v149 = vpop.f32.mrb[0].mxu0
    %v150 = vadd.f32 %v56, %v149
    %v151 = vpop.f32.mrb[0].mxu0
    %152 = vmatprep.mubr.f32.mxu0 0.0
    %153 = vmatmul.mubr.f32.gmra.mrb[0].mxu0 %v63
    %v154 = vpop.f32.mrb[0].mxu0
    %v155 = vadd.f32 %v56, %v154
    %v156 = vpop.f32.mrb[0].mxu0
    %157 = vmatprep.mubr.f32.mxu0 0.0
    %158 = vmatmul.mubr.f32.gmra.mrb[0].mxu0 %v66
    %v159 = vpop.f32.mrb[0].mxu0
    %v160 = vadd.f32 %v56, %v159
    %v161 = vpop.f32.mrb[0].mxu0
    %162 = vmatprep.mubr.f32.mxu0 0.0
    %163 = vmatmul.mubr.f32.gmra.mrb[0].mxu0 %v69
    %v164 = vpop.f32.mrb[0].mxu0
    %v165 = vadd.f32 %v56, %v164
    %v166 = vpop.f32.mrb[0].mxu0
    %167 = vmatprep.mubr.f32.mxu0 0.0
    %168 = vmatmul.mubr.f32.gmra.mrb[0].mxu0 %v72
    %v169 = vpop.f32.mrb[0].mxu0
    %v170 = vadd.f32 %v56, %v169
    %v171 = vpop.f32.mrb[0].mxu0
    %172 = vmatprep.mubr.f32.mxu0 0.0
    %173 = vmatmul.mubr.f32.gmra.mrb[0].mxu0 %v75
    %v174 = vpop.f32.mrb[0].mxu0
    %v175 = vadd.f32 %v56, %v174
    %v176 = vpop.f32.mrb[0].mxu0
    %177 = vmatprep.mubr.f32.mxu0 0.0
    %178 = vmatmul.mubr.f32.gmra.mrb[0].mxu0 %v78
    %v179 = vpop.f32.mrb[0].mxu0
    %v180 = vadd.f32 %v56, %v179
    %v181 = vpop.f32.mrb[0].mxu0
    %182 = vmatprep.mubr.f32.mxu0 0.0
    %183 = vmatmul.mubr.f32.gmra.mrb[0].mxu0 %v81
    %v184 = vpop.f32.mrb[0].mxu0
    %v185 = vadd.f32 %v56, %v184
    %v186 = vpop.f32.mrb[0].mxu0
    %187 = vdwg.mxu0
    %v188 = vmax.f32 %v150, 0.0
    %v189 = vmax.f32 %v155, 0.0
    %v190 = vmax.f32 %v160, 0.0
    %v191 = vmax.f32 %v165, 0.0
    %v192 = vmax.f32 %v170, 0.0
    %v193 = vmax.f32 %v175, 0.0
    %v194 = vmax.f32 %v180, 0.0
    %v195 = vmax.f32 %v185, 0.0
    %v196 = vld [vmem:[%s3] sm:$0x1]
    %v198 = vlaneseq
    %v199 = vshrl.u32 %v198, 7
    %v200 = vsub.s32 0, %v199
    %v201 = vrot.slane %v196, %v200
    %v203 = vmul.f32 %v188, %v201
    %v204 = vmul.f32 %v189, %v201
    %v205 = vmul.f32 %v190, %v201
    %v206 = vmul.f32 %v191, %v201
    %v207 = vmul.f32 %v192, %v201
    %v208 = vmul.f32 %v193, %v201
    %v209 = vmul.f32 %v194, %v201
    %v210 = vmul.f32 %v195, %v201
    %vm211 = vcmask 130048
    %v212 = vsel %vm211, %v203, 0.0
    %213 = vadd.xlane.f32.xlu0 %v212
    %v214 = vpop.xlane.xlu0 %213
    %v215 = vsel %vm211, %v204, 0.0
    %216 = vadd.xlane.f32.xlu0 %v215
    %v217 = vpop.xlane.xlu0 %216
    %v218 = vsel %vm211, %v205, 0.0
    %219 = vadd.xlane.f32.xlu0 %v218
    %v220 = vpop.xlane.xlu0 %219
    %v221 = vsel %vm211, %v206, 0.0
    %222 = vadd.xlane.f32.xlu0 %v221
    %v223 = vpop.xlane.xlu0 %222
    %v224 = vsel %vm211, %v207, 0.0
    %225 = vadd.xlane.f32.xlu0 %v224
    %v226 = vpop.xlane.xlu0 %225
    %v227 = vsel %vm211, %v208, 0.0
    %228 = vadd.xlane.f32.xlu0 %v227
    %v229 = vpop.xlane.xlu0 %228
    %v230 = vsel %vm211, %v209, 0.0
    %231 = vadd.xlane.f32.xlu0 %v230
    %v232 = vpop.xlane.xlu0 %231
    %v233 = vsel %vm211, %v210, 0.0
    %234 = vadd.xlane.f32.xlu0 %v233
    %v235 = vpop.xlane.xlu0 %234
    %s236 = sld [smem:[#allocation2]]
    %v237 = vstv %s236
    %v238 = vadd.f32 %v214, %v237
    %v239 = vadd.f32 %v217, %v237
    %v240 = vadd.f32 %v220, %v237
    %v241 = vadd.f32 %v223, %v237
    %v242 = vadd.f32 %v226, %v237
    %v243 = vadd.f32 %v229, %v237
    %v244 = vadd.f32 %v232, %v237
    %v245 = vadd.f32 %v235, %v237
    %v246 = vrot.slane %v238, 4
    %v247 = vmax.f32 %v238, %v246
    %v248 = vrot.slane %v247, 2
    %v249 = vmax.f32 %v247, %v248
    %v250 = vrot.slane %v249, 1
    %v251 = vmax.f32 %v249, %v250
    %v252 = vrot.slane %v239, 4
    %v253 = vmax.f32 %v239, %v252
    %v254 = vrot.slane %v253, 2
    %v255 = vmax.f32 %v253, %v254
    %v256 = vrot.slane %v255, 1
    %v257 = vmax.f32 %v255, %v256
    %v258 = vrot.slane %v240, 4
    %v259 = vmax.f32 %v240, %v258
    %v260 = vrot.slane %v259, 2
    %v261 = vmax.f32 %v259, %v260
    %v262 = vrot.slane %v261, 1
    %v263 = vmax.f32 %v261, %v262
    %v264 = vrot.slane %v241, 4
    %v265 = vmax.f32 %v241, %v264
    %v266 = vrot.slane %v265, 2
    %v267 = vmax.f32 %v265, %v266
    %v268 = vrot.slane %v267, 1
    %v269 = vmax.f32 %v267, %v268
    %v270 = vrot.slane %v242, 4
    %v271 = vmax.f32 %v242, %v270
    %v272 = vrot.slane %v271, 2
    %v273 = vmax.f32 %v271, %v272
    %v274 = vrot.slane %v273, 1
    %v275 = vmax.f32 %v273, %v274
    %v276 = vrot.slane %v243, 4
    %v277 = vmax.f32 %v243, %v276
    %v278 = vrot.slane %v277, 2
    %v279 = vmax.f32 %v277, %v278
    %v280 = vrot.slane %v279, 1
    %v281 = vmax.f32 %v279, %v280
    %v282 = vrot.slane %v244, 4
    %v283 = vmax.f32 %v244, %v282
    %v284 = vrot.slane %v283, 2
    %v285 = vmax.f32 %v283, %v284
    %v286 = vrot.slane %v285, 1
    %v287 = vmax.f32 %v285, %v286
    %v288 = vrot.slane %v245, 4
    %v289 = vmax.f32 %v245, %v288
    %v290 = vrot.slane %v289, 2
    %v291 = vmax.f32 %v289, %v290
    %v292 = vrot.slane %v291, 1
    %v293 = vmax.f32 %v291, %v292
    %v294 = vsub.f32 %v238, %v251
    %v295 = vsub.f32 %v239, %v257
    %v296 = vsub.f32 %v240, %v263
    %v297 = vsub.f32 %v241, %v269
    %v298 = vsub.f32 %v242, %v275
    %v299 = vsub.f32 %v243, %v281
    %v300 = vsub.f32 %v244, %v287
    %v301 = vsub.f32 %v245, %v293
    %v302 = vmul.f32 %v294, 1.442695
    %v303 = vpow.pop %v302
    %v304 = vmul.f32 %v295, 1.442695
    %v305 = vpow.pop %v304
    %v306 = vmul.f32 %v296, 1.442695
    %v307 = vpow.pop %v306
    %v308 = vmul.f32 %v297, 1.442695
    %v309 = vpow.pop %v308
    %v310 = vmul.f32 %v298, 1.442695
    %v311 = vpow.pop %v310
    %v312 = vmul.f32 %v299, 1.442695
    %v313 = vpow.pop %v312
    %v314 = vmul.f32 %v300, 1.442695
    %v315 = vpow.pop %v314
    %v316 = vmul.f32 %v301, 1.442695
    %v317 = vpow.pop %v316
    %v318 = vrot.slane %v303, 4
    %v319 = vadd.f32 %v303, %v318
    %v320 = vrot.slane %v319, 2
    %v321 = vadd.f32 %v319, %v320
    %v322 = vrot.slane %v321, 1
    %v323 = vadd.f32 %v321, %v322
    %v324 = vrot.slane %v305, 4
    %v325 = vadd.f32 %v305, %v324
    %v326 = vrot.slane %v325, 2
    %v327 = vadd.f32 %v325, %v326
    %v328 = vrot.slane %v327, 1
    %v329 = vadd.f32 %v327, %v328
    %v330 = vrot.slane %v307, 4
    %v331 = vadd.f32 %v307, %v330
    %v332 = vrot.slane %v331, 2
    %v333 = vadd.f32 %v331, %v332
    %v334 = vrot.slane %v333, 1
    %v335 = vadd.f32 %v333, %v334
    %v336 = vrot.slane %v309, 4
    %v337 = vadd.f32 %v309, %v336
    %v338 = vrot.slane %v337, 2
    %v339 = vadd.f32 %v337, %v338
    %v340 = vrot.slane %v339, 1
    %v341 = vadd.f32 %v339, %v340
    %v342 = vrot.slane %v311, 4
    %v343 = vadd.f32 %v311, %v342
    %v344 = vrot.slane %v343, 2
    %v345 = vadd.f32 %v343, %v344
    %v346 = vrot.slane %v345, 1
    %v347 = vadd.f32 %v345, %v346
    %v348 = vrot.slane %v313, 4
    %v349 = vadd.f32 %v313, %v348
    %v350 = vrot.slane %v349, 2
    %v351 = vadd.f32 %v349, %v350
    %v352 = vrot.slane %v351, 1
    %v353 = vadd.f32 %v351, %v352
    %v354 = vrot.slane %v315, 4
    %v355 = vadd.f32 %v315, %v354
    %v356 = vrot.slane %v355, 2
    %v357 = vadd.f32 %v355, %v356
    %v358 = vrot.slane %v357, 1
    %v359 = vadd.f32 %v357, %v358
    %v360 = vrot.slane %v317, 4
    %v361 = vadd.f32 %v317, %v360
    %v362 = vrot.slane %v361, 2
    %v363 = vadd.f32 %v361, %v362
    %v364 = vrot.slane %v363, 1
    %v365 = vadd.f32 %v363, %v364
    %v366 = vrcp.pop %v323
    %v367 = vrcp.pop %v329
    %v368 = vrcp.pop %v335
    %v369 = vrcp.pop %v341
    %v370 = vrcp.pop %v347
    %v371 = vrcp.pop %v353
    %v372 = vrcp.pop %v359
    %v373 = vrcp.pop %v365
    %v374 = vmul.f32 %v303, %v366
    %v375 = vmul.f32 %v305, %v367
    %v376 = vmul.f32 %v307, %v368
    %v377 = vmul.f32 %v309, %v369
    %v378 = vmul.f32 %v311, %v370
    %v379 = vmul.f32 %v313, %v371
    %v380 = vmul.f32 %v315, %v372
    %v381 = vmul.f32 %v317, %v373
    %v390 = vlaneseq
    %v391 = vand.u32 %v390, 127
    %v392 = vlaneseq
    %v393 = vshrl.u32 %v392, 7
    %v394 = vsub.s32 %v391, %v393
    %v395 = vrot.slane %v374, %v394
    %v396 = vlaneseq
    %v397 = vshrl.u32 %v396, 7
    %v398 = vsub.s32 %v391, %v397
    %v399 = vrot.slane %v375, %v398
    %v400 = vlaneseq
    %v401 = vshrl.u32 %v400, 7
    %v402 = vsub.s32 %v391, %v401
    %v403 = vrot.slane %v376, %v402
    %v404 = vlaneseq
    %v405 = vshrl.u32 %v404, 7
    %v406 = vsub.s32 %v391, %v405
    %v407 = vrot.slane %v377, %v406
    %v408 = vlaneseq
    %v409 = vshrl.u32 %v408, 7
    %v410 = vsub.s32 %v391, %v409
    %v411 = vrot.slane %v378, %v410
    %v412 = vlaneseq
    %v413 = vshrl.u32 %v412, 7
    %v414 = vsub.s32 %v391, %v413
    %v415 = vrot.slane %v379, %v414
    %v416 = vlaneseq
    %v417 = vshrl.u32 %v416, 7
    %v418 = vsub.s32 %v391, %v417
    %v419 = vrot.slane %v380, %v418
    %v420 = vlaneseq
    %v421 = vshrl.u32 %v420, 7
    %v422 = vsub.s32 %v391, %v421
    %v423 = vrot.slane %v381, %v422
    %vm424 = vcmask 1041409
    %v425 = vsel %vm424, %v399, %v395
    %vm426 = vcmask 1042434
    %v427 = vsel %vm426, %v403, %v425
    %vm428 = vcmask 1043459
    %v429 = vsel %vm428, %v407, %v427
    %vm430 = vcmask 1044484
    %v431 = vsel %vm430, %v411, %v429
    %vm432 = vcmask 1045509
    %v433 = vsel %vm432, %v415, %v431
    %vm434 = vcmask 1046534
    %v435 = vsel %vm434, %v419, %v433
    %vm436 = vcmask 1047559
    %v437 = vsel %vm436, %v423, %v435
    %vm439 = vcmask 64512
    %440 = vst.msk [vmem:[#allocation7] sm:$0xff] %vm439, %v437
    %v441 = vmul.f32 %v39, %v374
    %v442 = vmul.f32 %v40, %v375
    %v443 = vmul.f32 %v41, %v376
    %v444 = vmul.f32 %v42, %v377
    %v445 = vmul.f32 %v43, %v378
    %v446 = vmul.f32 %v44, %v379
    %v447 = vmul.f32 %v45, %v380
    %v448 = vmul.f32 %v46, %v381
    %v449 = vcombine.low %v441, %v443
    %v450 = vcombine.high %v441, %v443
    %v452 = vunpack.c.l.s4 1983009808
    %v453 = vunpack.c.0.s8 %v452
    %v454 = vlaneseq
    %v455 = vshrl.u32 %v454, 7
    %v456 = vsub.s32 %v453, %v455
    %v457 = vrot.slane %v449, %v456
    %v459 = vunpack.c.l.s4 1983009808
    %v460 = vunpack.c.0.s8 %v459
    %v461 = vlaneseq
    %v462 = vshrl.u32 %v461, 7
    %v463 = vsub.s32 %v460, %v462
    %v464 = vrot.slane %v450, %v463
    %v465 = vcombine.low %v442, %v444
    %v466 = vcombine.high %v442, %v444
    %v468 = vunpack.c.l.s4 1983009808
    %v469 = vunpack.c.0.s8 %v468
    %v470 = vlaneseq
    %v471 = vshrl.u32 %v470, 7
    %v472 = vsub.s32 %v469, %v471
    %v473 = vrot.slane %v465, %v472
    %v475 = vunpack.c.l.s4 1983009808
    %v476 = vunpack.c.0.s8 %v475
    %v477 = vlaneseq
    %v478 = vshrl.u32 %v477, 7
    %v479 = vsub.s32 %v476, %v478
    %v480 = vrot.slane %v466, %v479
    %v481 = vcombine.low %v445, %v447
    %v482 = vcombine.high %v445, %v447
    %v484 = vunpack.c.l.s4 1983009808
    %v485 = vunpack.c.0.s8 %v484
    %v486 = vlaneseq
    %v487 = vshrl.u32 %v486, 7
    %v488 = vsub.s32 %v485, %v487
    %v489 = vrot.slane %v481, %v488
    %v491 = vunpack.c.l.s4 1983009808
    %v492 = vunpack.c.0.s8 %v491
    %v493 = vlaneseq
    %v494 = vshrl.u32 %v493, 7
    %v495 = vsub.s32 %v492, %v494
    %v496 = vrot.slane %v482, %v495
    %v497 = vcombine.low %v446, %v448
    %v498 = vcombine.high %v446, %v448
    %v500 = vunpack.c.l.s4 1983009808
    %v501 = vunpack.c.0.s8 %v500
    %v502 = vlaneseq
    %v503 = vshrl.u32 %v502, 7
    %v504 = vsub.s32 %v501, %v503
    %v505 = vrot.slane %v497, %v504
    %v507 = vunpack.c.l.s4 1983009808
    %v508 = vunpack.c.0.s8 %v507
    %v509 = vlaneseq
    %v510 = vshrl.u32 %v509, 7
    %v511 = vsub.s32 %v508, %v510
    %v512 = vrot.slane %v498, %v511
    %v513 = vcombine.low %v457, %v473
    %v514 = vcombine.high %v457, %v473
    %v516 = vunpack.c.l.s4 1934713408
    %v517 = vunpack.c.0.s8 %v516
    %v518 = vlaneseq
    %v519 = vshrl.u32 %v518, 7
    %v520 = vsub.s32 %v517, %v519
    %v521 = vrot.slane %v513, %v520
    %v523 = vunpack.c.l.s4 1934713408
    %v524 = vunpack.c.0.s8 %v523
    %v525 = vlaneseq
    %v526 = vshrl.u32 %v525, 7
    %v527 = vsub.s32 %v524, %v526
    %v528 = vrot.slane %v514, %v527
    %v529 = vcombine.low %v464, %v480
    %v530 = vcombine.high %v464, %v480
    %v532 = vunpack.c.l.s4 1934713408
    %v533 = vunpack.c.0.s8 %v532
    %v534 = vlaneseq
    %v535 = vshrl.u32 %v534, 7
    %v536 = vsub.s32 %v533, %v535
    %v537 = vrot.slane %v529, %v536
    %v539 = vunpack.c.l.s4 1934713408
    %v540 = vunpack.c.0.s8 %v539
    %v541 = vlaneseq
    %v542 = vshrl.u32 %v541, 7
    %v543 = vsub.s32 %v540, %v542
    %v544 = vrot.slane %v530, %v543
    %v545 = vcombine.low %v489, %v505
    %v546 = vcombine.high %v489, %v505
    %v548 = vunpack.c.l.s4 1934713408
    %v549 = vunpack.c.0.s8 %v548
    %v550 = vlaneseq
    %v551 = vshrl.u32 %v550, 7
    %v552 = vsub.s32 %v549, %v551
    %v553 = vrot.slane %v545, %v552
    %v555 = vunpack.c.l.s4 1934713408
    %v556 = vunpack.c.0.s8 %v555
    %v557 = vlaneseq
    %v558 = vshrl.u32 %v557, 7
    %v559 = vsub.s32 %v556, %v558
    %v560 = vrot.slane %v546, %v559
    %v561 = vcombine.low %v496, %v512
    %v562 = vcombine.high %v496, %v512
    %v564 = vunpack.c.l.s4 1934713408
    %v565 = vunpack.c.0.s8 %v564
    %v566 = vlaneseq
    %v567 = vshrl.u32 %v566, 7
    %v568 = vsub.s32 %v565, %v567
    %v569 = vrot.slane %v561, %v568
    %v571 = vunpack.c.l.s4 1934713408
    %v572 = vunpack.c.0.s8 %v571
    %v573 = vlaneseq
    %v574 = vshrl.u32 %v573, 7
    %v575 = vsub.s32 %v572, %v574
    %v576 = vrot.slane %v562, %v575
    %v577 = vcombine.low %v521, %v553
    %v578 = vcombine.high %v521, %v553
    %v579 = vcombine.low %v528, %v560
    %v580 = vcombine.high %v528, %v560
    %v581 = vcombine.low %v537, %v569
    %v582 = vcombine.high %v537, %v569
    %v583 = vcombine.low %v544, %v576
    %v584 = vcombine.high %v544, %v576
    %586 = vrot.lane.b32.xlu0 %v578, 32
    %v587 = vpop.permute.xlu0 %586
    %590 = vrot.lane.b32.xlu0 %v579, 64
    %v591 = vpop.permute.xlu0 %590
    %594 = vrot.lane.b32.xlu0 %v580, 96
    %v595 = vpop.permute.xlu0 %594
    %598 = vrot.lane.b32.xlu0 %v582, 32
    %v599 = vpop.permute.xlu0 %598
    %602 = vrot.lane.b32.xlu0 %v583, 64
    %v603 = vpop.permute.xlu0 %602
    %606 = vrot.lane.b32.xlu0 %v584, 96
    %v607 = vpop.permute.xlu0 %606
    %v609 = vsel %vm58, %v577, %v587
    %vm610 = vcmask 523264
    %v611 = vsel %vm610, %v609, %v591
    %vm612 = vcmask 785408
    %v613 = vsel %vm612, %v611, %v595
    %v614 = vsel %vm58, %v581, %v599
    %v615 = vsel %vm610, %v614, %v603
    %v616 = vsel %vm612, %v615, %v607
    %617 = vst [vmem:[#allocation6] sm:$0xff] %v613
    %618 = vst [vmem:[#allocation6 + $0x8] sm:$0xff] %v616
    // Predicated region
    $region26: #{tpu_custom_call.1} parent=1 // pred_check
      _
    $region27: #{tpu_custom_call.1} parent=1 // pred_check_branch
      %620 = sbr.rel (0) target = $region29
    $region28: #{tpu_custom_call.1} parent=1 // pred_region
      %s622 = ssub.s32 256, 256
      %623 = vsyncadd [#allocation5], %s622
      %s625 = sshll.u32 [#allocation6], 4
      %s626 = int_to_ptr.vmem [resolvable:$true] %s625
      %628 = dma.vmem_to_hbm [thread:$0]  %s626, 256, %s5, [#allocation5]
    $region29: #{tpu_custom_call.1} parent=1 // pred_fallthru
      _
    // Predicated region
    $region30: #{tpu_custom_call.1} parent=1 // pred_check
      _
    $region31: #{tpu_custom_call.1} parent=1 // pred_check_branch
      %630 = sbr.rel (0) target = $region33
    $region32: #{tpu_custom_call.1} parent=1 // pred_region
      %s632 = ssub.s32 128, 128
      %633 = vsyncadd [#allocation8], %s632
      %s635 = sshll.u32 [#allocation7], 4
      %s636 = int_to_ptr.vmem [resolvable:$true] %s635
      %638 = dma.vmem_to_hbm [thread:$0]  %s636, 128, %s6, [#allocation8]
    $region33: #{tpu_custom_call.1} parent=1 // pred_fallthru
      _
    // Predicated region
    $region34: #{tpu_custom_call.1} parent=1 // pred_check
      _
    $region35: #{tpu_custom_call.1} parent=1 // pred_check_branch
      %640 = sbr.rel (0) target = $region37
    $region36: #{tpu_custom_call.1} parent=1 // pred_region
      %641 = dma.done [#allocation5], 256
    $region37: #{tpu_custom_call.1} parent=1 // pred_fallthru
      _
    // Predicated region
    $region38: #{tpu_custom_call.1} parent=1 // pred_check
      _
    $region39: #{tpu_custom_call.1} parent=1 // pred_check_branch
      %643 = sbr.rel (0) target = $region41
    $region40: #{tpu_custom_call.1} parent=1 // pred_region
      %644 = dma.done [#allocation8], 128
    $region41: #{tpu_custom_call.1} parent=1 // pred_fallthru
      _
    %645 = vsyncpa [#allocation4], 1
    %646 = vsyncpa [#allocation5], 1
    %647 = vsyncpa [#allocation8], 1

</llo_original>
